<compile_context>
chip_gen: v5e
topology: v5e:2x2
jax: 0.10.0
libtpu: 0.0.40
codegen_flags: <defaults>
</compile_context>

<pallas_src>
import functools

import jax
import jax.numpy as jnp
from jax import lax
from jax.experimental import pallas as pl
from jax.experimental.pallas import tpu as pltpu


def _round_up(n: int, m: int) -> int:
    return ((n + m - 1) // m) * m


def _cdiv(a: int, b: int) -> int:
    return (a + b - 1) // b


def _device_kind() -> str:
    try:
        return jax.devices()[0].device_kind.lower()
    except Exception:
        return ""


def _vmem_capacity_bytes() -> int:
    try:
        return int(pltpu.get_tpu_info().vmem_capacity_bytes)
    except Exception:
        pass
    # Fallback: v7x has 64 MiB per TensorCore, earlier generations 128 MiB.
    return (64 if "v7" in _device_kind() else 128) * 1024 * 1024


def _num_tensorcores() -> int:
    # v7x has 2 TensorCores per chip; "parallel" grid axes are sharded across them.
    return 2 if "v7" in _device_kind() else 1


def _sublane_pack(dtype) -> int:
    # Native row packing: 8 for 32-bit, 16 for bf16, 32 for int8/fp8.
    bits = jnp.dtype(dtype).itemsize * 8
    return max(8, (32 // max(bits, 1)) * 8)


def _lane_granule(dtype) -> int:
    # 128 is always legal; sub-32-bit dtypes on the 256-wide MXU generations
    # (v6e/v7x) prefer 256-aligned feature dims to fill each MXU pass.
    kind = _device_kind()
    wide_mxu = not any(t in kind for t in ("v2", "v3", "v4", "v5 lite", "v5e"))
    if jnp.dtype(dtype).itemsize < 4 and wide_mxu:
        return 256
    return 128


def _ffn_kernel(x_ref, w1_ref, b1_ref, w2_ref, ln_ref, o_ref, acc_ref,
                *, eps: float, d_in: int):
    k = pl.program_id(1)

    @pl.when(k == 0)
    def _():
        acc_ref[...] = jnp.zeros_like(acc_ref)

    # ---- one d_hid panel: relu(x @ W1_panel + b1_panel) @ W2_panel ----
    x = x_ref[...]
    x_mxu = x.astype(w1_ref.dtype)      # no-op unless an explicit MXU dtype was requested
    h = jnp.dot(x_mxu, w1_ref[...], preferred_element_type=jnp.float32) + b1_ref[...]
    h = jnp.maximum(h, 0.0)
    acc_ref[...] += jnp.dot(h.astype(w2_ref.dtype), w2_ref[...],
                            preferred_element_type=jnp.float32)

    # ---- epilogue on the last panel: bias2 + residual + LayerNorm ----
    @pl.when(k == pl.num_programs(1) - 1)
    def _():
        ln = ln_ref[...]                              # (3, d_in_p) f32
        b2 = ln[0:1, :]
        gamma = ln[1:2, :]
        beta = ln[2:3, :]

        # dropout (eval) = identity; residual add in f32.
        y = acc_ref[...] + b2 + x.astype(jnp.float32)

        d_pad = y.shape[-1]
        inv_n = jnp.float32(1.0 / d_in)
        # Padded lanes of y are exactly zero by construction (zero-padded x,
        # W1/W2 columns, b1/b2 and residual), so the mean needs no mask; only
        # the centered values are re-masked before the variance.
        mean = jnp.sum(y, axis=-1, keepdims=True) * inv_n
        centered = y - mean
        if d_pad != d_in:
            lane = lax.broadcasted_iota(jnp.int32, y.shape, dimension=1)
            centered = jnp.where(lane < d_in, centered, 0.0)
        var = jnp.sum(centered * centered, axis=-1, keepdims=True) * inv_n
        # Note: padded token rows (Mp > M) are all-zero -> var = 0 -> rsqrt(eps),
        # finite and discarded by the final slice in the wrapper.
        norm = centered * lax.rsqrt(var + eps)
        o_ref[...] = (norm * gamma + beta).astype(o_ref.dtype)


def positionwise_feed_forward(x, w1, b1, w2, b2, gamma, beta, *,
                              eps: float = 1e-5, tile_m: int = 512,
                              tile_k: int = 512, mxu_dtype=None):
    """x: (B, S, d_in).  Weights stored (in_features, out_features).  Returns (B, S, d_in)."""
    B, S, d_in = x.shape
    d_hid = w1.shape[1]
    M = B * S

    if mxu_dtype is not None:
        # Optional reduced-precision MXU path (e.g. jnp.bfloat16); cast once here.
        w1 = w1.astype(mxu_dtype)
        w2 = w2.astype(mxu_dtype)

    x_bytes = jnp.dtype(x.dtype).itemsize
    w_bytes = jnp.dtype(w1.dtype).itemsize

    granule = _lane_granule(x.dtype)
    sublane = _sublane_pack(x.dtype)
    d_in_p = _round_up(d_in, granule)

    # ---- VMEM-budgeted, generation-aware tile selection ----
    capacity = _vmem_capacity_bytes()
    budget = (capacity * 3) // 4          # headroom for compiler scratch / semaphores

    tile_m_eff = max(_round_up(min(tile_m, _round_up(M, sublane)), sublane), sublane)
    tile_k_eff = max(_round_up(min(tile_k, _round_up(d_hid, granule)), 128), 128)

    def vmem_needed(tm, tk):
        return (2 * tm * d_in_p * x_bytes          # x tile (double-buffered)
                + 2 * tm * d_in_p * x_bytes        # out tile
                + 2 * d_in_p * tk * w_bytes        # W1 panel
                + 2 * tk * d_in_p * w_bytes        # W2 panel
                + 2 * 8 * tk * 4                   # b1 panel (sublane padded)
                + 8 * d_in_p * 4                   # packed b2/gamma/beta (1 buffer)
                + tm * d_in_p * 4                  # f32 accumulator scratch
                + tm * tk * 4)                     # live f32 `h` intermediate

    while vmem_needed(tile_m_eff, tile_k_eff) > budget and tile_k_eff > 128:
        tile_k_eff = max(128, _round_up(tile_k_eff // 2, 128))
    while vmem_needed(tile_m_eff, tile_k_eff) > budget and tile_m_eff > sublane:
        tile_m_eff = max(sublane, _round_up(tile_m_eff // 2, sublane))

    # v7x: make sure the "parallel" M axis has >= 1 grid step per TensorCore.
    n_cores = _num_tensorcores()
    while _cdiv(M, tile_m_eff) < n_cores and tile_m_eff > sublane:
        tile_m_eff = max(sublane, _round_up(tile_m_eff // 2, sublane))

    Mp = _round_up(M, tile_m_eff)
    d_hid_p = _round_up(d_hid, tile_k_eff)
    n_m = Mp // tile_m_eff
    n_k = d_hid_p // tile_k_eff

    # ---- zero-pad operands (zero padding keeps the linear algebra identical) ----
    x2d = jnp.pad(x.reshape(M, d_in), ((0, Mp - M), (0, d_in_p - d_in)))
    w1p = jnp.pad(w1, ((0, d_in_p - d_in), (0, d_hid_p - d_hid)))
    w2p = jnp.pad(w2, ((0, d_hid_p - d_hid), (0, d_in_p - d_in)))
    b1r = jnp.pad(b1.astype(jnp.float32), (0, d_hid_p - d_hid)).reshape(1, d_hid_p)
    # b2 / LN gamma / LN beta packed into one (3, d_in_p) f32 operand.
    ln_pack = jnp.stack([
        jnp.pad(b2.astype(jnp.float32), (0, d_in_p - d_in)),
        jnp.pad(gamma.astype(jnp.float32), (0, d_in_p - d_in)),
        jnp.pad(beta.astype(jnp.float32), (0, d_in_p - d_in)),
    ], axis=0)

    kernel = functools.partial(_ffn_kernel, eps=eps, d_in=d_in)

    cost = pl.CostEstimate(
        flops=4 * Mp * d_in_p * d_hid_p,             # two matmuls
        transcendentals=Mp,                          # one rsqrt per token row
        bytes_accessed=(2 * Mp * d_in_p * x_bytes    # x in + out
                        + 2 * d_in_p * d_hid_p * w_bytes
                        + 4 * (d_hid_p + 3 * d_in_p)),
    )

    vmem_limit = int(min(capacity - (8 << 20),
                         max(vmem_needed(tile_m_eff, tile_k_eff) + (4 << 20),
                             32 << 20)))

    # Constant-index operand: single-buffer it (double-buffering a block that
    # never changes across the grid only doubles its VMEM footprint).
    try:
        ln_spec = pl.BlockSpec((3, d_in_p), lambda i, k: (0, 0),
                               pipeline_mode=pl.Buffered(1))
    except TypeError:  # older Pallas without pipeline_mode
        ln_spec = pl.BlockSpec((3, d_in_p), lambda i, k: (0, 0))

    out2d = pl.pallas_call(
        kernel,
        out_shape=jax.ShapeDtypeStruct((Mp, d_in_p), x.dtype),
        grid_spec=pltpu.PrefetchScalarGridSpec(
            num_scalar_prefetch=0,
            grid=(n_m, n_k),
            in_specs=[
                pl.BlockSpec((tile_m_eff, d_in_p), lambda i, k: (i, 0)),   # x tile
                pl.BlockSpec((d_in_p, tile_k_eff), lambda i, k: (0, k)),   # W1 panel
                pl.BlockSpec((1, tile_k_eff), lambda i, k: (0, k)),        # b1 panel
                pl.BlockSpec((tile_k_eff, d_in_p), lambda i, k: (k, 0)),   # W2 panel
                ln_spec,                                                   # b2/gamma/beta
            ],
            out_specs=pl.BlockSpec((tile_m_eff, d_in_p), lambda i, k: (i, 0)),
            scratch_shapes=[pltpu.VMEM((tile_m_eff, d_in_p), jnp.float32)],
        ),
        compiler_params=pltpu.CompilerParams(
            dimension_semantics=("parallel", "arbitrary"),
            vmem_limit_bytes=vmem_limit,
        ),
        cost_estimate=cost,
    )(x2d, w1p, b1r, w2p, ln_pack)

    return out2d[:M, :d_in].reshape(B, S, d_in)


def _reference(x, w1, b1, w2, b2, gamma, beta, eps=1e-5):
    B, S, d_in = x.shape
    xf = x.reshape(B * S, d_in).astype(jnp.float32)
    h = jnp.maximum(xf @ w1.astype(jnp.float32) + b1, 0.0)
    y = h @ w2.astype(jnp.float32) + b2
    y = y.reshape(B, S, d_in) + x.astype(jnp.float32)
    mean = jnp.mean(y, axis=-1, keepdims=True)
    var = jnp.mean((y - mean) ** 2, axis=-1, keepdims=True)
    return ((y - mean) * lax.rsqrt(var + eps)) * gamma + beta


if __name__ == "__main__":
    B, S, d_in, d_hid = 2, 8, 32, 64

    key = jax.random.PRNGKey(0)
    kx, k1, kb1, k2, kb2 = jax.random.split(key, 5)

    x = jax.random.normal(kx, (B, S, d_in), dtype=jnp.float32)

    # Deterministic parameter init (Kaiming-uniform-ish scale, like nn.Linear).
    lim1 = 1.0 / (d_in ** 0.5)
    lim2 = 1.0 / (d_hid ** 0.5)
    w1 = jax.random.uniform(k1, (d_in, d_hid), jnp.float32, -lim1, lim1)
    b1 = jax.random.uniform(kb1, (d_hid,), jnp.float32, -lim1, lim1)
    w2 = jax.random.uniform(k2, (d_hid, d_in), jnp.float32, -lim2, lim2)
    b2 = jax.random.uniform(kb2, (d_in,), jnp.float32, -lim2, lim2)
    gamma = jnp.ones((d_in,), jnp.float32)   # LayerNorm weight init
    beta = jnp.zeros((d_in,), jnp.float32)   # LayerNorm bias init

    out = positionwise_feed_forward(x, w1, b1, w2, b2, gamma, beta)
    jax.block_until_ready(out)

    ref = _reference(x, w1, b1, w2, b2, gamma, beta)
    assert out.shape == (B, S, d_in)
    assert jnp.allclose(out, ref, atol=1e-4, rtol=1e-4), "mismatch vs reference"

    print("KERNEL_OK")
</pallas_src>

<mosaic_0001>
module attributes {stable_mosaic.version = 11 : i64} {
  func.func @_ffn_kernel(%arg0: i32, %arg1: i32, %arg2: memref<16x128xf32, #tpu.memory_space<vmem>>, %arg3: memref<128x128xf32, #tpu.memory_space<vmem>>, %arg4: memref<1x128xf32, #tpu.memory_space<vmem>>, %arg5: memref<128x128xf32, #tpu.memory_space<vmem>>, %arg6: memref<3x128xf32, #tpu.memory_space<vmem>>, %arg7: memref<16x128xf32, #tpu.memory_space<vmem>>, %arg8: memref<16x128xf32, #tpu.memory_space<vmem>>) attributes {dimension_semantics = [#tpu.dimension_semantics<parallel>, #tpu.dimension_semantics<arbitrary>], iteration_bounds = array<i64: 1, 1>, scalar_prefetch = 0 : i64, scratch_operands = 1 : i64, tpu.core_type = #tpu.core_type<tc>, window_params = [{transform_indices = @transform_0, window_bounds = array<i64: 16, 128>}, {transform_indices = @transform_1, window_bounds = array<i64: 128, 128>}, {transform_indices = @transform_2, window_bounds = array<i64: 1, 128>}, {transform_indices = @transform_3, window_bounds = array<i64: 128, 128>}, {pipeline_mode = #tpu.pipeline_mode<synchronous>, transform_indices = @transform_4, window_bounds = array<i64: 3, 128>}, {transform_indices = @transform_5, window_bounds = array<i64: 16, 128>}]} {
    %c0_i32 = arith.constant 0 : i32
    %0 = arith.cmpi eq, %arg1, %c0_i32 : i32
    %1 = arith.extui %0 : i1 to i32
    %c0_i32_0 = arith.constant 0 : i32
    %2 = arith.cmpi ne, %1, %c0_i32_0 : i32
    scf.if %2 {
      %cst_16 = arith.constant 0.000000e+00 : f32
      %19 = vector.broadcast %cst_16 : f32 to vector<16x128xf32>
      %c0_17 = arith.constant 0 : index
      %c0_18 = arith.constant 0 : index
      %20 = vector.load %arg8[%c0_17, %c0_18] : memref<16x128xf32, #tpu.memory_space<vmem>>, vector<16x128xf32>
      tpu.vector_store %arg8[%c0_17, %c0_18], %19 {strides = array<i32>} : memref<16x128xf32, #tpu.memory_space<vmem>>, vector<16x128xf32>,
    } else {
    }
    %c0 = arith.constant 0 : index
    %c0_1 = arith.constant 0 : index
    %3 = vector.load %arg2[%c0, %c0_1] : memref<16x128xf32, #tpu.memory_space<vmem>>, vector<16x128xf32>
    %c0_2 = arith.constant 0 : index
    %c0_3 = arith.constant 0 : index
    %4 = vector.load %arg3[%c0_2, %c0_3] : memref<128x128xf32, #tpu.memory_space<vmem>>, vector<128x128xf32>
    %cst = arith.constant dense<0.000000e+00> : vector<16x128xf32>
    %5 = tpu.matmul %3, %4, %cst {dimension_numbers = #tpu.dot_dimension_numbers<[1], [0], [0], [1], [0, 0, 1, 1], [], []>} : vector<16x128xf32>, vector<128x128xf32>, vector<16x128xf32> -> vector<16x128xf32>
    %c0_4 = arith.constant 0 : index
    %c0_5 = arith.constant 0 : index
    %6 = vector.load %arg4[%c0_4, %c0_5] : memref<1x128xf32, #tpu.memory_space<vmem>>, vector<1x128xf32>
    %7 = vector.broadcast %6 : vector<1x128xf32> to vector<16x128xf32>
    %8 = arith.addf %5, %7 : vector<16x128xf32>
    %cst_6 = arith.constant 0.000000e+00 : f32
    %9 = vector.broadcast %cst_6 : f32 to vector<16x128xf32>
    %10 = arith.maximumf %8, %9 : vector<16x128xf32>
    %c0_7 = arith.constant 0 : index
    %c0_8 = arith.constant 0 : index
    %11 = vector.load %arg8[%c0_7, %c0_8] : memref<16x128xf32, #tpu.memory_space<vmem>>, vector<16x128xf32>
    %c0_9 = arith.constant 0 : index
    %c0_10 = arith.constant 0 : index
    %12 = vector.load %arg5[%c0_9, %c0_10] : memref<128x128xf32, #tpu.memory_space<vmem>>, vector<128x128xf32>
    %cst_11 = arith.constant dense<0.000000e+00> : vector<16x128xf32>
    %13 = tpu.matmul %10, %12, %cst_11 {dimension_numbers = #tpu.dot_dimension_numbers<[1], [0], [0], [1], [0, 0, 1, 1], [], []>} : vector<16x128xf32>, vector<128x128xf32>, vector<16x128xf32> -> vector<16x128xf32>
    %14 = arith.addf %11, %13 : vector<16x128xf32>
    %c0_12 = arith.constant 0 : index
    %c0_13 = arith.constant 0 : index
    %15 = vector.load %arg8[%c0_12, %c0_13] : memref<16x128xf32, #tpu.memory_space<vmem>>, vector<16x128xf32>
    tpu.vector_store %arg8[%c0_12, %c0_13], %14 {strides = array<i32>} : memref<16x128xf32, #tpu.memory_space<vmem>>, vector<16x128xf32>,
    %c0_i32_14 = arith.constant 0 : i32
    %16 = arith.cmpi eq, %arg1, %c0_i32_14 : i32
    %17 = arith.extui %16 : i1 to i32
    %c0_i32_15 = arith.constant 0 : i32
    %18 = arith.cmpi ne, %17, %c0_i32_15 : i32
    scf.if %18 {
      %c0_16 = arith.constant 0 : index
      %c0_17 = arith.constant 0 : index
      %19 = vector.load %arg6[%c0_16, %c0_17] : memref<3x128xf32, #tpu.memory_space<vmem>>, vector<3x128xf32>
      %20 = vector.extract_strided_slice %19 {offsets = [0, 0], sizes = [1, 128], strides = [1, 1]} : vector<3x128xf32> to vector<1x128xf32>
      %21 = vector.extract_strided_slice %19 {offsets = [1, 0], sizes = [1, 128], strides = [1, 1]} : vector<3x128xf32> to vector<1x128xf32>
      %22 = vector.extract_strided_slice %19 {offsets = [2, 0], sizes = [1, 128], strides = [1, 1]} : vector<3x128xf32> to vector<1x128xf32>
      %c0_18 = arith.constant 0 : index
      %c0_19 = arith.constant 0 : index
      %23 = vector.load %arg8[%c0_18, %c0_19] : memref<16x128xf32, #tpu.memory_space<vmem>>, vector<16x128xf32>
      %24 = vector.broadcast %20 : vector<1x128xf32> to vector<16x128xf32>
      %25 = arith.addf %23, %24 : vector<16x128xf32>
      %26 = arith.addf %25, %3 : vector<16x128xf32>
      %cst_20 = arith.constant dense<0.000000e+00> : vector<16xf32>
      %27 = vector.multi_reduction <add>, %26, %cst_20 [1] : vector<16x128xf32> to vector<16xf32>
      %28 = vector.shape_cast %27 : vector<16xf32> to vector<16x1xf32>
      %cst_21 = arith.constant 3.125000e-02 : f32
      %29 = vector.broadcast %cst_21 : f32 to vector<16x1xf32>
      %30 = arith.mulf %28, %29 : vector<16x1xf32>
      %31 = vector.broadcast %30 : vector<16x1xf32> to vector<16x128xf32>
      %32 = arith.subf %26, %31 : vector<16x128xf32>
      %33 = tpu.iota {dimensions = array<i32: 1>} : vector<16x128xi32>
      %c32_i32 = arith.constant 32 : i32
      %34 = vector.broadcast %c32_i32 : i32 to vector<16x128xi32>
      %35 = arith.cmpi slt, %33, %34 : vector<16x128xi32>
      %cst_22 = arith.constant 0.000000e+00 : f32
      %36 = vector.broadcast %cst_22 : f32 to vector<16x128xf32>
      %37 = arith.select %35, %32, %36 : vector<16x128xi1>, vector<16x128xf32>
      %38 = arith.mulf %37, %37 : vector<16x128xf32>
      %cst_23 = arith.constant dense<0.000000e+00> : vector<16xf32>
      %39 = vector.multi_reduction <add>, %38, %cst_23 [1] : vector<16x128xf32> to vector<16xf32>
      %40 = vector.shape_cast %39 : vector<16xf32> to vector<16x1xf32>
      %cst_24 = arith.constant 3.125000e-02 : f32
      %41 = vector.broadcast %cst_24 : f32 to vector<16x1xf32>
      %42 = arith.mulf %40, %41 : vector<16x1xf32>
      %cst_25 = arith.constant 9.99999974E-6 : f32
      %43 = vector.broadcast %cst_25 : f32 to vector<16x1xf32>
      %44 = arith.addf %42, %43 : vector<16x1xf32>
      %45 = math.rsqrt %44 : vector<16x1xf32>
      %46 = vector.broadcast %45 : vector<16x1xf32> to vector<16x128xf32>
      %47 = arith.mulf %37, %46 : vector<16x128xf32>
      %48 = vector.broadcast %21 : vector<1x128xf32> to vector<16x128xf32>
      %49 = arith.mulf %47, %48 : vector<16x128xf32>
      %50 = vector.broadcast %22 : vector<1x128xf32> to vector<16x128xf32>
      %51 = arith.addf %49, %50 : vector<16x128xf32>
      %c0_26 = arith.constant 0 : index
      %c0_27 = arith.constant 0 : index
      %52 = vector.load %arg7[%c0_26, %c0_27] : memref<16x128xf32, #tpu.memory_space<vmem>>, vector<16x128xf32>
      tpu.vector_store %arg7[%c0_26, %c0_27], %51 {strides = array<i32>} : memref<16x128xf32, #tpu.memory_space<vmem>>, vector<16x128xf32>,
    } else {
    }
    return
  }
  func.func @transform_0(%arg0: i32, %arg1: i32) -> (i32, i32) {
    %c0_i32 = arith.constant 0 : i32
    %c0_i32_0 = arith.constant 0 : i32
    return %arg0, %c0_i32 : i32, i32
  }
  func.func @transform_1(%arg0: i32, %arg1: i32) -> (i32, i32) {
    %c0_i32 = arith.constant 0 : i32
    %c0_i32_0 = arith.constant 0 : i32
    return %c0_i32, %arg1 : i32, i32
  }
  func.func @transform_2(%arg0: i32, %arg1: i32) -> (i32, i32) {
    %c0_i32 = arith.constant 0 : i32
    %c0_i32_0 = arith.constant 0 : i32
    return %c0_i32, %arg1 : i32, i32
  }
  func.func @transform_3(%arg0: i32, %arg1: i32) -> (i32, i32) {
    %c0_i32 = arith.constant 0 : i32
    %c0_i32_0 = arith.constant 0 : i32
    return %arg1, %c0_i32 : i32, i32
  }
  func.func @transform_4(%arg0: i32, %arg1: i32) -> (i32, i32) {
    %c0_i32 = arith.constant 0 : i32
    %c0_i32_0 = arith.constant 0 : i32
    %c0_i32_1 = arith.constant 0 : i32
    return %c0_i32, %c0_i32_0 : i32, i32
  }
  func.func @transform_5(%arg0: i32, %arg1: i32) -> (i32, i32) {
    %c0_i32 = arith.constant 0 : i32
    %c0_i32_0 = arith.constant 0 : i32
    return %arg0, %c0_i32 : i32, i32
  }
}

</mosaic_0001>

<llo_original>
// kernel: tpu_custom_call.1
$region0: #{tpu_custom_call.1}
  #allocation0 [shape = 'u32[]', space=smem, size = 0x4, offset = 0x4, fixed_abs, tag = 'smem constant byte address 0x4 - core index']
  #allocation1 [shape = 'u32[72,128]{1,0:T(1,128)}', space=vmem, size = 0x9000, scoped, tag = 'internal scratch']
  #allocation2 [shape = 'f32[16,128]{1,0:T(8,128)}', space=vmem, size = 0x2000, scoped, tag = 'scratch operand']
  %s0 = inlined_call_operand.hbm [shape: f32[16,128], index: 0, kind: input, shape index: {}]
  %s1 = inlined_call_operand.hbm [shape: f32[128,128], index: 1, kind: input, shape index: {}]
  %s2 = inlined_call_operand.vmem [shape: f32[1,128], index: 2, kind: input, shape index: {}]
  %s3 = inlined_call_operand.hbm [shape: f32[128,128], index: 3, kind: input, shape index: {}]
  %s4 = inlined_call_operand.hbm [shape: f32[3,128], index: 4, kind: input, shape index: {}]
  %s5 = inlined_call_operand.hbm [shape: f32[16,128], index: 5, kind: output, shape index: {}]
  %s6 = sld [smem:[#allocation0]]
  $region54: #{tpu_custom_call.1} parent=0
    _
  %s8 = ssub.s32 1, %s6
  %s9 = scalar_select 0, %s8, %s6
  $region1: #{tpu_custom_call.1} parent=0
    #allocation3 [shape = 'u8[8192]{0}', space=vmem, size = 0x2000, scoped, tag = 'input window, operand 0, single buffered']
    #allocation4 [shape = 's32[1]{0}', space=sflag, size = 0x4, scoped, tag = 'scoped memory for tpu_custom_call.1']
    #allocation5 [shape = 's32[1]{0}', space=sflag, size = 0x4, scoped, tag = 'scoped memory for tpu_custom_call.1']
    #allocation6 [shape = 'u8[65536]{0}', space=vmem, size = 0x10000, scoped, tag = 'input window, operand 1, single buffered']
    #allocation7 [shape = 's32[1]{0}', space=sflag, size = 0x4, scoped, tag = 'scoped memory for tpu_custom_call.1']
    #allocation8 [shape = 'u8[65536]{0}', space=vmem, size = 0x10000, scoped, tag = 'input window, operand 3, single buffered']
    #allocation9 [shape = 'u8[2048]{0}', space=vmem, size = 0x800, scoped, tag = 'input window, operand 4, single buffered']
    #allocation10 [shape = 's32[1]{0}', space=sflag, size = 0x4, scoped, tag = 'scoped memory for tpu_custom_call.1']
    #allocation11 [shape = 'u8[8192]{0}', space=vmem, size = 0x2000, scoped, tag = 'output window, operand 0, single buffered']
    %10 = vsyncpa [#allocation4], 0
    %11 = vsyncpa [#allocation7], 0
    %12 = vsyncpa [#allocation10], 0
    %13 = vsyncpa [#allocation5], 0
    // Predicated region
    $region2: #{tpu_custom_call.1} parent=1 // pred_check
      _
    $region3: #{tpu_custom_call.1} parent=1 // pred_check_branch
      %15 = sbr.rel (0) target = $region5
    $region4: #{tpu_custom_call.1} parent=1 // pred_region
      %17 = vsyncadd [#allocation4], 0
      %s18 = sshll.u32 %s0, 4
      %s19 = int_to_ptr.hbm [resolvable:$true] %s18
      %s20 = sshll.u32 [#allocation3], 4
      %s21 = int_to_ptr.vmem [resolvable:$true] %s20
      %26 = dma.hbm_to_vmem [thread:$0]  %s19, 256, %s21, [#allocation4], 128, 128, 8
    $region5: #{tpu_custom_call.1} parent=1 // pred_fallthru
      _
    // Predicated region
    $region6: #{tpu_custom_call.1} parent=1 // pred_check
      _
    $region7: #{tpu_custom_call.1} parent=1 // pred_check_branch
      %28 = sbr.rel (0) target = $region9
    $region8: #{tpu_custom_call.1} parent=1 // pred_region
      %30 = vsyncadd [#allocation7], 0
      %s31 = sshll.u32 %s1, 4
      %s32 = int_to_ptr.hbm [resolvable:$true] %s31
      %s33 = sshll.u32 [#allocation6], 4
      %s34 = int_to_ptr.vmem [resolvable:$true] %s33
      %39 = dma.hbm_to_vmem [thread:$0]  %s32, 2048, %s34, [#allocation7], 128, 128, 8
    $region9: #{tpu_custom_call.1} parent=1 // pred_fallthru
      _
    // Predicated region
    $region10: #{tpu_custom_call.1} parent=1 // pred_check
      _
    $region11: #{tpu_custom_call.1} parent=1 // pred_check_branch
      %41 = sbr.rel (0) target = $region13
    $region12: #{tpu_custom_call.1} parent=1 // pred_region
      _
    $region13: #{tpu_custom_call.1} parent=1 // pred_fallthru
      _
    // Predicated region
    $region14: #{tpu_custom_call.1} parent=1 // pred_check
      _
    $region15: #{tpu_custom_call.1} parent=1 // pred_check_branch
      %43 = sbr.rel (0) target = $region17
    $region16: #{tpu_custom_call.1} parent=1 // pred_region
      %45 = vsyncadd [#allocation7], 0
      %s46 = sshll.u32 %s3, 4
      %s47 = int_to_ptr.hbm [resolvable:$true] %s46
      %s48 = sshll.u32 [#allocation8], 4
      %s49 = int_to_ptr.vmem [resolvable:$true] %s48
      %54 = dma.hbm_to_vmem [thread:$0]  %s47, 2048, %s49, [#allocation7], 128, 128, 8
    $region17: #{tpu_custom_call.1} parent=1 // pred_fallthru
      _
    // Predicated region
    $region18: #{tpu_custom_call.1} parent=1 // pred_check
      _
    $region19: #{tpu_custom_call.1} parent=1 // pred_check_branch
      %56 = sbr.rel (0) target = $region21
    $region20: #{tpu_custom_call.1} parent=1 // pred_region
      %58 = vsyncadd [#allocation10], 0
      %s60 = sshll.u32 %s4, 4
      %s61 = int_to_ptr.hbm [resolvable:$true] %s60
      %s62 = sshll.u32 [#allocation9], 4
      %s63 = int_to_ptr.vmem [resolvable:$true] %s62
      %65 = dma.hbm_to_vmem [thread:$0]  %s61, 64, %s63, [#allocation10]
    $region21: #{tpu_custom_call.1} parent=1 // pred_fallthru
      _
    // Predicated region
    $region22: #{tpu_custom_call.1} parent=1 // pred_check
      _
    $region23: #{tpu_custom_call.1} parent=1 // pred_check_branch
      %67 = sbr.rel (0) target = $region25
    $region24: #{tpu_custom_call.1} parent=1 // pred_region
      %69 = dma.done [#allocation4], 256
    $region25: #{tpu_custom_call.1} parent=1 // pred_fallthru
      _
    // Predicated region
    $region26: #{tpu_custom_call.1} parent=1 // pred_check
      _
    $region27: #{tpu_custom_call.1} parent=1 // pred_check_branch
      %71 = sbr.rel (0) target = $region29
    $region28: #{tpu_custom_call.1} parent=1 // pred_region
      %73 = dma.done [#allocation7], 2048
    $region29: #{tpu_custom_call.1} parent=1 // pred_fallthru
      _
    // Predicated region
    $region30: #{tpu_custom_call.1} parent=1 // pred_check
      _
    $region31: #{tpu_custom_call.1} parent=1 // pred_check_branch
      %75 = sbr.rel (0) target = $region33
    $region32: #{tpu_custom_call.1} parent=1 // pred_region
      %77 = dma.done [#allocation7], 2048
    $region33: #{tpu_custom_call.1} parent=1 // pred_fallthru
      _
    // Predicated region
    $region34: #{tpu_custom_call.1} parent=1 // pred_check
      _
    $region35: #{tpu_custom_call.1} parent=1 // pred_check_branch
      %79 = sbr.rel (0) target = $region37
    $region36: #{tpu_custom_call.1} parent=1 // pred_region
      %81 = dma.done [#allocation10], 64
    $region37: #{tpu_custom_call.1} parent=1 // pred_fallthru
      _
    %p82 = scmp.eq.s32.totalorder 0, 0
    // Predicated region
    $region38: #{tpu_custom_call.1} parent=1 // pred_check
      %p83 = pneg %p82
    $region39: #{tpu_custom_call.1} parent=1 // pred_check_branch
      %85 = sbr.rel (%p83) target = $region41
    $region40: #{tpu_custom_call.1} parent=1 // pred_region
      %86 = vst [vmem:[#allocation2] sm:$0xff] 0.0
      %87 = vst [vmem:[#allocation2 + $0x8] sm:$0xff] 0.0
    $region41: #{tpu_custom_call.1} parent=1 // pred_fallthru
      _
    %v88 = vld [vmem:[#allocation3] sm:$0xff]
    %v89 = vld [vmem:[#allocation3 + $0x8] sm:$0xff]
    %v90 = vld [vmem:[#allocation6] sm:$0xff]
    %v91 = vld [vmem:[#allocation6 + $0x8] sm:$0xff]
    %v92 = vld [vmem:[#allocation6 + $0x10] sm:$0xff]
    %v93 = vld [vmem:[#allocation6 + $0x18] sm:$0xff]
    %v94 = vld [vmem:[#allocation6 + $0x20] sm:$0xff]
    %v95 = vld [vmem:[#allocation6 + $0x28] sm:$0xff]
    %v96 = vld [vmem:[#allocation6 + $0x30] sm:$0xff]
    %v97 = vld [vmem:[#allocation6 + $0x38] sm:$0xff]
    %v98 = vld [vmem:[#allocation6 + $0x40] sm:$0xff]
    %v99 = vld [vmem:[#allocation6 + $0x48] sm:$0xff]
    %v100 = vld [vmem:[#allocation6 + $0x50] sm:$0xff]
    %v101 = vld [vmem:[#allocation6 + $0x58] sm:$0xff]
    %v102 = vld [vmem:[#allocation6 + $0x60] sm:$0xff]
    %v103 = vld [vmem:[#allocation6 + $0x68] sm:$0xff]
    %v104 = vld [vmem:[#allocation6 + $0x70] sm:$0xff]
    %v105 = vld [vmem:[#allocation6 + $0x78] sm:$0xff]
    %v106 = vld [vmem:[%s2] sm:$0x1]
    %v108 = vperm.slane %v106, 0
    %110 = vmatpush.msra.mxu0 %v105
    %111 = vmatpush.msra.mxu0 %v104
    %112 = vmatpush.msra.mxu0 %v103
    %113 = vmatpush.msra.mxu0 %v102
    %114 = vmatpush.msra.mxu0 %v101
    %115 = vmatpush.msra.mxu0 %v100
    %116 = vmatpush.msra.mxu0 %v99
    %117 = vmatpush.msra.mxu0 %v98
    %118 = vmatpush.msra.mxu0 %v97
    %119 = vmatpush.msra.mxu0 %v96
    %120 = vmatpush.msra.mxu0 %v95
    %121 = vmatpush.msra.mxu0 %v94
    %122 = vmatpush.msra.mxu0 %v93
    %123 = vmatpush.msra.mxu0 %v92
    %124 = vmatpush.msra.mxu0 %v91
    %125 = vmatpush.msra.mxu0 %v90
    %126 = vmatmul.f32.gmra.mxu0 %v88
    %v127 = vpop.f32.mrf.mxu0
    %v128 = vadd.f32 %v108, %v127
    %129 = vmatmul.f32.gmra.mxu0 %v89
    %v130 = vpop.f32.mrf.mxu0
    %v131 = vadd.f32 %v108, %v130
    %132 = vdwg.mxu0
    %v133 = vmax.f32 %v128, 0.0
    %v134 = vmax.f32 %v131, 0.0
    %v135 = vld [vmem:[#allocation2] sm:$0xff]
    %v136 = vld [vmem:[#allocation2 + $0x8] sm:$0xff]
    %v137 = vld [vmem:[#allocation8] sm:$0xff]
    %v138 = vld [vmem:[#allocation8 + $0x8] sm:$0xff]
    %v139 = vld [vmem:[#allocation8 + $0x10] sm:$0xff]
    %v140 = vld [vmem:[#allocation8 + $0x18] sm:$0xff]
    %v141 = vld [vmem:[#allocation8 + $0x20] sm:$0xff]
    %v142 = vld [vmem:[#allocation8 + $0x28] sm:$0xff]
    %v143 = vld [vmem:[#allocation8 + $0x30] sm:$0xff]
    %v144 = vld [vmem:[#allocation8 + $0x38] sm:$0xff]
    %v145 = vld [vmem:[#allocation8 + $0x40] sm:$0xff]
    %v146 = vld [vmem:[#allocation8 + $0x48] sm:$0xff]
    %v147 = vld [vmem:[#allocation8 + $0x50] sm:$0xff]
    %v148 = vld [vmem:[#allocation8 + $0x58] sm:$0xff]
    %v149 = vld [vmem:[#allocation8 + $0x60] sm:$0xff]
    %v150 = vld [vmem:[#allocation8 + $0x68] sm:$0xff]
    %v151 = vld [vmem:[#allocation8 + $0x70] sm:$0xff]
    %v152 = vld [vmem:[#allocation8 + $0x78] sm:$0xff]
    %153 = vmatpush.msra.mxu0 %v152
    %154 = vmatpush.msra.mxu0 %v151
    %155 = vmatpush.msra.mxu0 %v150
    %156 = vmatpush.msra.mxu0 %v149
    %157 = vmatpush.msra.mxu0 %v148
    %158 = vmatpush.msra.mxu0 %v147
    %159 = vmatpush.msra.mxu0 %v146
    %160 = vmatpush.msra.mxu0 %v145
    %161 = vmatpush.msra.mxu0 %v144
    %162 = vmatpush.msra.mxu0 %v143
    %163 = vmatpush.msra.mxu0 %v142
    %164 = vmatpush.msra.mxu0 %v141
    %165 = vmatpush.msra.mxu0 %v140
    %166 = vmatpush.msra.mxu0 %v139
    %167 = vmatpush.msra.mxu0 %v138
    %168 = vmatpush.msra.mxu0 %v137
    %169 = vmatmul.f32.gmra.mxu0 %v133
    %v170 = vpop.f32.mrf.mxu0
    %v171 = vadd.f32 0.0, %v170
    %172 = vmatmul.f32.gmra.mxu0 %v134
    %v173 = vpop.f32.mrf.mxu0
    %v174 = vadd.f32 0.0, %v173
    %175 = vdwg.mxu0
    %v176 = vadd.f32 %v135, %v171
    %v177 = vadd.f32 %v136, %v174
    %178 = vst [vmem:[#allocation2] sm:$0xff] %v176
    %179 = vst [vmem:[#allocation2 + $0x8] sm:$0xff] %v177
    // Predicated region
    $region42: #{tpu_custom_call.1} parent=1 // pred_check
      %p180 = pneg %p82
    $region43: #{tpu_custom_call.1} parent=1 // pred_check_branch
      %182 = sbr.rel (%p180) target = $region45
    $region44: #{tpu_custom_call.1} parent=1 // pred_region
      %v183 = vld [vmem:[#allocation9] sm:$0x7]
      %v184 = vld [vmem:[#allocation2] sm:$0xff]
      %v185 = vld [vmem:[#allocation2 + $0x8] sm:$0xff]
      %v186 = vperm.slane %v183, 0
      %v187 = vadd.f32 %v184, %v186
      %v188 = vadd.f32 %v185, %v186
      %v189 = vadd.f32 %v187, %v88
      %v190 = vadd.f32 %v188, %v89
      %191 = vadd.xlane.f32.xlu0 %v189
      %v192 = vpop.xlane.xlu0 %191
      %193 = vadd.xlane.f32.xlu0 %v190
      %v194 = vpop.xlane.xlu0 %193
      %v195 = vmul.f32 %v192, 0.03125
      %v196 = vmul.f32 %v194, 0.03125
      %v197 = vsub.f32 %v189, %v195
      %v198 = vsub.f32 %v190, %v196
      %v199 = vlaneseq
      %v200 = vand.u32 %v199, 127
      %vm201 = vcmp.lt.s32.totalorder %v200, 32
      %v202 = vsel %vm201, %v197, 0.0
      %v203 = vsel %vm201, %v198, 0.0
      %v204 = vmul.f32 %v202, %v202
      %v205 = vmul.f32 %v203, %v203
      %206 = vadd.xlane.f32.xlu0 %v204
      %v207 = vpop.xlane.xlu0 %206
      %208 = vadd.xlane.f32.xlu0 %v205
      %v209 = vpop.xlane.xlu0 %208
      %v210 = vmul.f32 %v207, 0.03125
      %v211 = vmul.f32 %v209, 0.03125
      %v212 = vadd.f32 %v210, 1e-05
      %v213 = vadd.f32 %v211, 1e-05
      %v214 = vrsqrt.pop %v212
      %v215 = vmul.f32 %v214, %v212
      %v216 = vmul.f32 %v215, %v214
      %v217 = vmul.f32 0.5, %v216
      %v218 = vsub.f32 1.5, %v217
      %v219 = vmul.f32 %v214, %v218
      %vm220 = vweird.f32 %v212
      %vm221 = vweird.f32 %v214
      %vm222 = vmor %vm220, %vm221
      %v223 = vsel %vm222, %v214, %v219
      %v224 = vrsqrt.pop %v213
      %v225 = vmul.f32 %v224, %v213
      %v226 = vmul.f32 %v225, %v224
      %v227 = vmul.f32 0.5, %v226
      %v228 = vsub.f32 1.5, %v227
      %v229 = vmul.f32 %v224, %v228
      %vm230 = vweird.f32 %v213
      %vm231 = vweird.f32 %v224
      %vm232 = vmor %vm230, %vm231
      %v233 = vsel %vm232, %v224, %v229
      %v234 = vmul.f32 %v202, %v223
      %v235 = vmul.f32 %v203, %v233
      %v236 = vperm.slane %v183, 1
      %v237 = vmul.f32 %v234, %v236
      %v238 = vmul.f32 %v235, %v236
      %v239 = vperm.slane %v183, 2
      %v240 = vadd.f32 %v237, %v239
      %v241 = vadd.f32 %v238, %v239
      %242 = vst [vmem:[#allocation11] sm:$0xff] %v240
      %243 = vst [vmem:[#allocation11 + $0x8] sm:$0xff] %v241
    $region45: #{tpu_custom_call.1} parent=1 // pred_fallthru
      _
    // Predicated region
    $region46: #{tpu_custom_call.1} parent=1 // pred_check
      _
    $region47: #{tpu_custom_call.1} parent=1 // pred_check_branch
      %245 = sbr.rel (0) target = $region49
    $region48: #{tpu_custom_call.1} parent=1 // pred_region
      %247 = vsyncadd [#allocation5], 0
      %s248 = sshll.u32 [#allocation11], 4
      %s249 = int_to_ptr.vmem [resolvable:$true] %s248
      %s250 = sshll.u32 %s5, 4
      %s251 = int_to_ptr.hbm [resolvable:$true] %s250
      %256 = dma.vmem_to_hbm [thread:$0]  %s249, 256, %s251, [#allocation5], 128, 128, 8
    $region49: #{tpu_custom_call.1} parent=1 // pred_fallthru
      _
    // Predicated region
    $region50: #{tpu_custom_call.1} parent=1 // pred_check
      _
    $region51: #{tpu_custom_call.1} parent=1 // pred_check_branch
      %258 = sbr.rel (0) target = $region53
    $region52: #{tpu_custom_call.1} parent=1 // pred_region
      %260 = dma.done [#allocation5], 256
    $region53: #{tpu_custom_call.1} parent=1 // pred_fallthru
      _
    %261 = vsyncpa [#allocation4], 1
    %262 = vsyncpa [#allocation7], 1
    %263 = vsyncpa [#allocation10], 1
    %264 = vsyncpa [#allocation5], 1

</llo_original>
